<compile_context>
chip_gen: v7x
topology: tpu7x:2x2x1
jax: 0.10.0
libtpu: 0.0.40
codegen_flags: <defaults>
</compile_context>

<pallas_src>
import jax
import jax.numpy as jnp
from jax import lax
from jax.experimental import pallas as pl
from jax.experimental.pallas import tpu as pltpu

# Small synthetic env dims (gym 'k8s-v0' is not available; pick consistent sizes)
N_STATES = 8     # env.observation_space.shape[0]
N_ACTIONS = 4    # env.action_space.n
HIDDEN = 50      # as in the PyTorch module

_MIN_TILE = 128
_MAX_TILE = 32768        # double-buffered footprint ~36 MiB -> fits v7x's 64 MiB
_DEFAULT_TILE = 16384    # ~18 MiB double-buffered; per-step DMA >> 0.35 us overhead


def _round_up(n: int, m: int) -> int:
    return ((n + m - 1) // m) * m


def _mlp_kernel(x_ref, w1_ref, b1_ref, w2_ref, b2_ref, oT_ref):
    # x  : [tb, N_STATES]      f32  (natural PyTorch layout, streamed per step)
    # w1 : [HIDDEN, N_STATES]  f32  (PyTorch-native [out, in], VMEM-resident)
    # b1 : [HIDDEN, 1]         f32
    # w2 : [N_ACTIONS, HIDDEN] f32  (VMEM-resident)
    # b2 : [N_ACTIONS, 1]      f32
    # oT : [N_ACTIONS, tb]     f32  (lane-dense output, batch on lanes)
    x = x_ref[...]
    # h = W1 @ x^T : contract on N_STATES.  The x-tile transpose this implies
    # lands on the XLU and hides under the HBM DMA of the next x tile.
    h = lax.dot_general(
        w1_ref[...], x,
        dimension_numbers=(((1,), (1,)), ((), ())),
        preferred_element_type=jnp.float32)                      # [HIDDEN, tb]
    h = jnp.maximum(h + b1_ref[...], 0.0)                        # bias + ReLU
    out = jnp.dot(w2_ref[...], h,
                  preferred_element_type=jnp.float32)            # [N_ACTIONS, tb]
    oT_ref[...] = (out + b2_ref[...]).astype(oT_ref.dtype)


def _pick_tile(batch: int, batch_tile: int) -> int:
    bt = max(_MIN_TILE, min(_MAX_TILE, _round_up(int(batch_tile), _MIN_TILE)))
    b128 = _round_up(max(batch, 1), _MIN_TILE)
    tb = min(bt, b128)
    # If a single tile would cover a large batch, split it in two so both
    # TensorCores on v7x get a grid step ("parallel" axis); no-op on v5e/v6e.
    if tb >= b128 and b128 >= 2048:
        tb = _round_up((b128 + 1) // 2, _MIN_TILE)
    return tb


def net_forward_t(x, w1, b1, w2, b2, *, batch_tile=_DEFAULT_TILE):
    """Fast path.  x: [B, N_STATES] f32 (natural layout, no wrapper passes).
    Returns actions-first [N_ACTIONS, B] f32 (lane-dense; prefer consuming this
    layout directly — argmax/gather over actions works on it)."""
    B, S = x.shape
    assert S == N_STATES
    tb = _pick_tile(B, batch_tile)
    grid = (pl.cdiv(B, tb),)   # ragged tail handled by Pallas boundary masking

    b1c = b1.reshape(HIDDEN, 1).astype(jnp.float32)
    b2c = b2.reshape(N_ACTIONS, 1).astype(jnp.float32)

    # VMEM budget upper bound (lane/sublane-padded tiles, double buffered).
    x_blk = (_round_up(tb, 8) // 8) * 128 * 4      # (tb, 8)  f32 -> ~512*tb bytes
    o_blk = 8 * _round_up(tb, 128) * 4             # (4, tb)  f32 -> ~32*tb bytes
    vmem_limit = min(max(2 * (x_blk + o_blk) + (4 << 20), 16 << 20), 56 << 20)

    out_t = pl.pallas_call(
        _mlp_kernel,
        out_shape=jax.ShapeDtypeStruct((N_ACTIONS, B), jnp.float32),
        grid_spec=pltpu.PrefetchScalarGridSpec(
            num_scalar_prefetch=0,
            grid=grid,
            in_specs=[
                pl.BlockSpec((tb, N_STATES), lambda i: (i, 0)),       # streamed x tile
                pl.BlockSpec((HIDDEN, N_STATES), lambda i: (0, 0)),   # resident params
                pl.BlockSpec((HIDDEN, 1), lambda i: (0, 0)),
                pl.BlockSpec((N_ACTIONS, HIDDEN), lambda i: (0, 0)),
                pl.BlockSpec((N_ACTIONS, 1), lambda i: (0, 0)),
            ],
            out_specs=pl.BlockSpec((N_ACTIONS, tb), lambda i: (0, i)),
        ),
        compiler_params=pltpu.CompilerParams(
            dimension_semantics=("parallel",),     # megacore on v7x; no-op v5e/v6e
            vmem_limit_bytes=int(vmem_limit),
        ),
    )(x.astype(jnp.float32), w1.astype(jnp.float32), b1c,
      w2.astype(jnp.float32), b2c)
    return out_t


def net_forward(x, w1, b1, w2, b2, *, batch_tile=_DEFAULT_TILE):
    """PyTorch-layout wrapper: returns [B, N_ACTIONS].  Callers that can stay
    on the actions-first layout should call net_forward_t and skip this
    transpose (it is an extra HBM pass over a lane-padded [B,4] array)."""
    return net_forward_t(x, w1, b1, w2, b2, batch_tile=batch_tile).T


def net_forward_reference(x, w1, b1, w2, b2):
    """Pure-JAX f32 reference matching the PyTorch module."""
    h = jnp.maximum(x @ w1.T + b1, 0.0)
    return h @ w2.T + b2


def init_params(key):
    """Mirror the PyTorch module: weights ~ N(0, 0.1); biases use the
    nn.Linear default U(-1/sqrt(fan_in), +).  Weights stay in PyTorch-native
    [out_features, in_features] layout."""
    k1, k2, k3, k4 = jax.random.split(key, 4)
    w1 = 0.1 * jax.random.normal(k1, (HIDDEN, N_STATES), jnp.float32)
    w2 = 0.1 * jax.random.normal(k2, (N_ACTIONS, HIDDEN), jnp.float32)
    bound1 = 1.0 / jnp.sqrt(jnp.float32(N_STATES))
    bound2 = 1.0 / jnp.sqrt(jnp.float32(HIDDEN))
    b1 = jax.random.uniform(k3, (HIDDEN,), jnp.float32, -bound1, bound1)
    b2 = jax.random.uniform(k4, (N_ACTIONS,), jnp.float32, -bound2, bound2)
    return w1, b1, w2, b2


if __name__ == "__main__":
    key = jax.random.PRNGKey(0)
    kp, k1, k2, k3 = jax.random.split(key, 4)
    w1, b1, w2, b2 = init_params(kp)

    # 1) Tiny action-selection batch (B=2): single grid step, boundary-masked.
    x1 = jax.random.normal(k1, (2, N_STATES), jnp.float32)
    out1 = jax.block_until_ready(net_forward(x1, w1, b1, w2, b2))
    ref1 = net_forward_reference(x1, w1, b1, w2, b2)
    assert out1.shape == (2, N_ACTIONS)
    assert jnp.allclose(out1, ref1, atol=1e-2, rtol=1e-2), "mismatch (B=2)"

    # 2) Training-style batch, multi-step grid (pipelined x tiles, resident weights).
    x2 = jax.random.normal(k2, (384, N_STATES), jnp.float32)
    out2_t = jax.block_until_ready(net_forward_t(x2, w1, b1, w2, b2, batch_tile=128))
    ref2 = net_forward_reference(x2, w1, b1, w2, b2)
    assert out2_t.shape == (N_ACTIONS, 384)
    assert jnp.allclose(out2_t, ref2.T, atol=1e-2, rtol=1e-2), "mismatch (B=384)"

    # 3) Ragged batch (not a multiple of the tile): last block boundary-masked, no pad copy.
    x3 = jax.random.normal(k3, (200, N_STATES), jnp.float32)
    out3_t = jax.block_until_ready(net_forward_t(x3, w1, b1, w2, b2, batch_tile=128))
    ref3 = net_forward_reference(x3, w1, b1, w2, b2)
    assert out3_t.shape == (N_ACTIONS, 200)
    assert jnp.allclose(out3_t, ref3.T, atol=1e-2, rtol=1e-2), "mismatch (B=200)"

    print("KERNEL_OK")
</pallas_src>

<mosaic_0001>
module attributes {stable_mosaic.version = 11 : i64} {
  func.func @_mlp_kernel(%arg0: i32, %arg1: memref<128x8xf32, #tpu.memory_space<vmem>>, %arg2: memref<50x8xf32, #tpu.memory_space<vmem>>, %arg3: memref<50x1xf32, #tpu.memory_space<vmem>>, %arg4: memref<4x50xf32, #tpu.memory_space<vmem>>, %arg5: memref<4x1xf32, #tpu.memory_space<vmem>>, %arg6: memref<4x128xf32, #tpu.memory_space<vmem>>) attributes {dimension_semantics = [#tpu.dimension_semantics<parallel>], iteration_bounds = array<i64: 1>, scalar_prefetch = 0 : i64, scratch_operands = 0 : i64, tpu.core_type = #tpu.core_type<tc>, window_params = [{transform_indices = @transform_0, window_bounds = array<i64: 128, 8>}, {pipeline_mode = #tpu.pipeline_mode<synchronous>, transform_indices = @transform_1, window_bounds = array<i64: 50, 8>}, {pipeline_mode = #tpu.pipeline_mode<synchronous>, transform_indices = @transform_2, window_bounds = array<i64: 50, 1>}, {pipeline_mode = #tpu.pipeline_mode<synchronous>, transform_indices = @transform_3, window_bounds = array<i64: 4, 50>}, {pipeline_mode = #tpu.pipeline_mode<synchronous>, transform_indices = @transform_4, window_bounds = array<i64: 4, 1>}, {transform_indices = @transform_5, window_bounds = array<i64: 4, 128>}]} {
    %c0 = arith.constant 0 : index
    %c0_0 = arith.constant 0 : index
    %0 = vector.load %arg1[%c0, %c0_0] : memref<128x8xf32, #tpu.memory_space<vmem>>, vector<128x8xf32>
    %c0_1 = arith.constant 0 : index
    %c0_2 = arith.constant 0 : index
    %1 = vector.load %arg2[%c0_1, %c0_2] : memref<50x8xf32, #tpu.memory_space<vmem>>, vector<50x8xf32>
    %cst = arith.constant dense<0.000000e+00> : vector<50x128xf32>
    %2 = tpu.matmul %1, %0, %cst {dimension_numbers = #tpu.dot_dimension_numbers<[1], [1], [0], [0], [0, 0, 1, 0], [], []>} : vector<50x8xf32>, vector<128x8xf32>, vector<50x128xf32> -> vector<50x128xf32>
    %c0_3 = arith.constant 0 : index
    %c0_4 = arith.constant 0 : index
    %3 = vector.load %arg3[%c0_3, %c0_4] : memref<50x1xf32, #tpu.memory_space<vmem>>, vector<50x1xf32>
    %4 = vector.broadcast %3 : vector<50x1xf32> to vector<50x128xf32>
    %5 = arith.addf %2, %4 : vector<50x128xf32>
    %cst_5 = arith.constant 0.000000e+00 : f32
    %6 = vector.broadcast %cst_5 : f32 to vector<50x128xf32>
    %7 = arith.maximumf %5, %6 : vector<50x128xf32>
    %c0_6 = arith.constant 0 : index
    %c0_7 = arith.constant 0 : index
    %8 = vector.load %arg4[%c0_6, %c0_7] : memref<4x50xf32, #tpu.memory_space<vmem>>, vector<4x50xf32>
    %cst_8 = arith.constant dense<0.000000e+00> : vector<4x128xf32>
    %9 = tpu.matmul %8, %7, %cst_8 {dimension_numbers = #tpu.dot_dimension_numbers<[1], [0], [0], [1], [0, 0, 1, 1], [], []>} : vector<4x50xf32>, vector<50x128xf32>, vector<4x128xf32> -> vector<4x128xf32>
    %c0_9 = arith.constant 0 : index
    %c0_10 = arith.constant 0 : index
    %10 = vector.load %arg5[%c0_9, %c0_10] : memref<4x1xf32, #tpu.memory_space<vmem>>, vector<4x1xf32>
    %11 = vector.broadcast %10 : vector<4x1xf32> to vector<4x128xf32>
    %12 = arith.addf %9, %11 : vector<4x128xf32>
    %c0_11 = arith.constant 0 : index
    %c0_12 = arith.constant 0 : index
    %13 = vector.load %arg6[%c0_11, %c0_12] : memref<4x128xf32, #tpu.memory_space<vmem>>, vector<4x128xf32>
    tpu.vector_store %arg6[%c0_11, %c0_12], %12 {strides = array<i32>} : memref<4x128xf32, #tpu.memory_space<vmem>>, vector<4x128xf32>,
    return
  }
  func.func @transform_0(%arg0: i32) -> (i32, i32) {
    %c0_i32 = arith.constant 0 : i32
    %c0_i32_0 = arith.constant 0 : i32
    return %arg0, %c0_i32 : i32, i32
  }
  func.func @transform_1(%arg0: i32) -> (i32, i32) {
    %c0_i32 = arith.constant 0 : i32
    %c0_i32_0 = arith.constant 0 : i32
    %c0_i32_1 = arith.constant 0 : i32
    return %c0_i32, %c0_i32_0 : i32, i32
  }
  func.func @transform_2(%arg0: i32) -> (i32, i32) {
    %c0_i32 = arith.constant 0 : i32
    %c0_i32_0 = arith.constant 0 : i32
    %c0_i32_1 = arith.constant 0 : i32
    return %c0_i32, %c0_i32_0 : i32, i32
  }
  func.func @transform_3(%arg0: i32) -> (i32, i32) {
    %c0_i32 = arith.constant 0 : i32
    %c0_i32_0 = arith.constant 0 : i32
    %c0_i32_1 = arith.constant 0 : i32
    return %c0_i32, %c0_i32_0 : i32, i32
  }
  func.func @transform_4(%arg0: i32) -> (i32, i32) {
    %c0_i32 = arith.constant 0 : i32
    %c0_i32_0 = arith.constant 0 : i32
    %c0_i32_1 = arith.constant 0 : i32
    return %c0_i32, %c0_i32_0 : i32, i32
  }
  func.func @transform_5(%arg0: i32) -> (i32, i32) {
    %c0_i32 = arith.constant 0 : i32
    %c0_i32_0 = arith.constant 0 : i32
    return %c0_i32, %arg0 : i32, i32
  }
}

</mosaic_0001>

<llo_original>
// kernel: tpu_custom_call.1
$region0: #{tpu_custom_call.1}
  #allocation0 [shape = 'u32[]', space=smem, size = 0x4, offset = 0x4, fixed_abs, tag = 'smem constant byte address 0x4 - core index']
  #allocation1 [shape = 'u32[144,128]{1,0:T(1,128)}', space=vmem, size = 0x12000, scoped, tag = 'internal scratch']
  %s0 = inlined_call_operand.vmem [shape: f32[2,8], index: 0, kind: input, shape index: {}]
  %s1 = inlined_call_operand.vmem [shape: f32[50,8], index: 1, kind: input, shape index: {}]
  %s2 = inlined_call_operand.vmem [shape: f32[50,1], index: 2, kind: input, shape index: {}]
  %s3 = inlined_call_operand.vmem [shape: f32[4,50], index: 3, kind: input, shape index: {}]
  %s4 = inlined_call_operand.vmem [shape: f32[4,1], index: 4, kind: input, shape index: {}]
  %s5 = inlined_call_operand.vmem [shape: f32[4,2], index: 5, kind: output, shape index: {}]
  %s6 = sld [smem:[#allocation0]]
  $region30: #{tpu_custom_call.1} parent=0
    _
  %s8 = ssub.s32 1, %s6
  %s9 = scalar_select 0, %s8, %s6
  // Predicated region
  $region2: #{tpu_custom_call.1} parent=0 // pred_check
    _
  $region3: #{tpu_custom_call.1} parent=0 // pred_check_branch
    %11 = sbr.rel (0) target = $region5
  $region4: #{tpu_custom_call.1} parent=0 // pred_region
    _
  $region5: #{tpu_custom_call.1} parent=0 // pred_fallthru
    _
  // Predicated region
  $region6: #{tpu_custom_call.1} parent=0 // pred_check
    _
  $region7: #{tpu_custom_call.1} parent=0 // pred_check_branch
    %13 = sbr.rel (0) target = $region9
  $region8: #{tpu_custom_call.1} parent=0 // pred_region
    _
  $region9: #{tpu_custom_call.1} parent=0 // pred_fallthru
    _
  // Predicated region
  $region10: #{tpu_custom_call.1} parent=0 // pred_check
    _
  $region11: #{tpu_custom_call.1} parent=0 // pred_check_branch
    %15 = sbr.rel (0) target = $region13
  $region12: #{tpu_custom_call.1} parent=0 // pred_region
    _
  $region13: #{tpu_custom_call.1} parent=0 // pred_fallthru
    _
  // Predicated region
  $region14: #{tpu_custom_call.1} parent=0 // pred_check
    _
  $region15: #{tpu_custom_call.1} parent=0 // pred_check_branch
    %17 = sbr.rel (0) target = $region17
  $region16: #{tpu_custom_call.1} parent=0 // pred_region
    _
  $region17: #{tpu_custom_call.1} parent=0 // pred_fallthru
    _
  // Predicated region
  $region18: #{tpu_custom_call.1} parent=0 // pred_check
    _
  $region19: #{tpu_custom_call.1} parent=0 // pred_check_branch
    %19 = sbr.rel (0) target = $region21
  $region20: #{tpu_custom_call.1} parent=0 // pred_region
    _
  $region21: #{tpu_custom_call.1} parent=0 // pred_fallthru
    _
  %v20 = vld [vmem:[%s0] sm:$0xff]
  %v21 = vld [vmem:[%s0 + $0x8] sm:$0xff]
  %v22 = vld [vmem:[%s0 + $0x10] sm:$0xff]
  %v23 = vld [vmem:[%s0 + $0x18] sm:$0xff]
  %v24 = vld [vmem:[%s0 + $0x20] sm:$0xff]
  %v25 = vld [vmem:[%s0 + $0x28] sm:$0xff]
  %v26 = vld [vmem:[%s0 + $0x30] sm:$0xff]
  %v27 = vld [vmem:[%s0 + $0x38] sm:$0xff]
  %v28 = vld [vmem:[%s0 + $0x40] sm:$0xff]
  %v29 = vld [vmem:[%s0 + $0x48] sm:$0xff]
  %v30 = vld [vmem:[%s0 + $0x50] sm:$0xff]
  %v31 = vld [vmem:[%s0 + $0x58] sm:$0xff]
  %v32 = vld [vmem:[%s0 + $0x60] sm:$0xff]
  %v33 = vld [vmem:[%s0 + $0x68] sm:$0xff]
  %v34 = vld [vmem:[%s0 + $0x70] sm:$0xff]
  %v35 = vld [vmem:[%s0 + $0x78] sm:$0xff]
  %v36 = vld [vmem:[%s1] sm:$0xff]
  %v37 = vld [vmem:[%s1 + $0x8] sm:$0xff]
  %v38 = vld [vmem:[%s1 + $0x10] sm:$0xff]
  %v39 = vld [vmem:[%s1 + $0x18] sm:$0xff]
  %v40 = vld [vmem:[%s1 + $0x20] sm:$0xff]
  %v41 = vld [vmem:[%s1 + $0x28] sm:$0xff]
  %v42 = vld [vmem:[%s1 + $0x30] sm:$0x3]
  %v43 = vld [vmem:[%s2] sm:$0xff]
  %v44 = vld [vmem:[%s2 + $0x8] sm:$0xff]
  %v45 = vld [vmem:[%s2 + $0x10] sm:$0xff]
  %v46 = vld [vmem:[%s2 + $0x18] sm:$0xff]
  %v47 = vld [vmem:[%s2 + $0x20] sm:$0xff]
  %v48 = vld [vmem:[%s2 + $0x28] sm:$0xff]
  %v49 = vld [vmem:[%s2 + $0x30] sm:$0x3]
  %51 = vset.pattern.permute.xlu0 0
  %52 = vperm.xlu0 %51, %v43
  %v53 = vpop.permute.xlu0 %52
  %56 = vset.pattern.permute.xlu0 0
  %57 = vperm.xlu0 %56, %v44
  %v58 = vpop.permute.xlu0 %57
  %61 = vset.pattern.permute.xlu0 0
  %62 = vperm.xlu0 %61, %v45
  %v63 = vpop.permute.xlu0 %62
  %66 = vset.pattern.permute.xlu0 0
  %67 = vperm.xlu0 %66, %v46
  %v68 = vpop.permute.xlu0 %67
  %71 = vset.pattern.permute.xlu0 0
  %72 = vperm.xlu0 %71, %v47
  %v73 = vpop.permute.xlu0 %72
  %76 = vset.pattern.permute.xlu0 0
  %77 = vperm.xlu0 %76, %v48
  %v78 = vpop.permute.xlu0 %77
  %81 = vset.pattern.permute.xlu0 0
  %82 = vperm.xlu0 %81, %v49
  %v83 = vpop.permute.xlu0 %82
  %vm85 = vcmask 64512
  %v87 = vsel %vm85, %v36, 0
  %v90 = vsel %vm85, %v37, 0
  %v93 = vsel %vm85, %v38, 0
  %v96 = vsel %vm85, %v39, 0
  %v99 = vsel %vm85, %v40, 0
  %v102 = vsel %vm85, %v41, 0
  %v105 = vsel %vm85, %v42, 0
  %v108 = vsel %vm85, %v20, 0
  %v111 = vsel %vm85, %v21, 0
  %v114 = vsel %vm85, %v22, 0
  %v117 = vsel %vm85, %v23, 0
  %v120 = vsel %vm85, %v24, 0
  %v123 = vsel %vm85, %v25, 0
  %v126 = vsel %vm85, %v26, 0
  %v129 = vsel %vm85, %v27, 0
  %v132 = vsel %vm85, %v28, 0
  %v135 = vsel %vm85, %v29, 0
  %v138 = vsel %vm85, %v30, 0
  %v141 = vsel %vm85, %v31, 0
  %v144 = vsel %vm85, %v32, 0
  %v147 = vsel %vm85, %v33, 0
  %v150 = vsel %vm85, %v34, 0
  %v153 = vsel %vm85, %v35, 0
  %155 = vmatprep.subr.mxu0 0.0
  %156 = vmatpush1.xpose.msra.mxu0 %v108
  %157 = vmatprep.subr.mxu0 0.0
  %158 = vmatpush1.xpose.msra.mxu0 %v111
  %159 = vmatprep.subr.mxu0 0.0
  %160 = vmatpush1.xpose.msra.mxu0 %v114
  %161 = vmatprep.subr.mxu0 0.0
  %162 = vmatpush1.xpose.msra.mxu0 %v117
  %163 = vmatprep.subr.mxu0 0.0
  %164 = vmatpush1.xpose.msra.mxu0 %v120
  %165 = vmatprep.subr.mxu0 0.0
  %166 = vmatpush1.xpose.msra.mxu0 %v123
  %167 = vmatprep.subr.mxu0 0.0
  %168 = vmatpush1.xpose.msra.mxu0 %v126
  %169 = vmatprep.subr.mxu0 0.0
  %170 = vmatpush1.xpose.msra.mxu0 %v129
  %171 = vmatprep.subr.mxu0 0.0
  %172 = vmatpush1.xpose.msra.mxu0 %v132
  %173 = vmatprep.subr.mxu0 0.0
  %174 = vmatpush1.xpose.msra.mxu0 %v135
  %175 = vmatprep.subr.mxu0 0.0
  %176 = vmatpush1.xpose.msra.mxu0 %v138
  %177 = vmatprep.subr.mxu0 0.0
  %178 = vmatpush1.xpose.msra.mxu0 %v141
  %179 = vmatprep.subr.mxu0 0.0
  %180 = vmatpush1.xpose.msra.mxu0 %v144
  %181 = vmatprep.subr.mxu0 0.0
  %182 = vmatpush1.xpose.msra.mxu0 %v147
  %183 = vmatprep.subr.mxu0 0.0
  %184 = vmatpush1.xpose.msra.mxu0 %v150
  %185 = vmatprep.subr.mxu0 0.0
  %186 = vmatpush1.xpose.msra.mxu0 %v153
  %187 = vmatprep.subr.mxu0 0.0
  %188 = vmatpush1.xpose.msra.mxu0 0.0
  %189 = vmatprep.subr.mxu0 0.0
  %190 = vmatpush1.xpose.msra.mxu0 0.0
  %191 = vmatprep.subr.mxu0 0.0
  %192 = vmatpush1.xpose.msra.mxu0 0.0
  %193 = vmatprep.subr.mxu0 0.0
  %194 = vmatpush1.xpose.msra.mxu0 0.0
  %195 = vmatprep.subr.mxu0 0.0
  %196 = vmatpush1.xpose.msra.mxu0 0.0
  %197 = vmatprep.subr.mxu0 0.0
  %198 = vmatpush1.xpose.msra.mxu0 0.0
  %199 = vmatprep.subr.mxu0 0.0
  %200 = vmatpush1.xpose.msra.mxu0 0.0
  %201 = vmatprep.subr.mxu0 0.0
  %202 = vmatpush1.xpose.msra.mxu0 0.0
  %203 = vmatprep.subr.mxu0 0.0
  %204 = vmatpush1.xpose.msra.mxu0 0.0
  %205 = vmatprep.subr.mxu0 0.0
  %206 = vmatpush1.xpose.msra.mxu0 0.0
  %207 = vmatprep.subr.mxu0 0.0
  %208 = vmatpush1.xpose.msra.mxu0 0.0
  %209 = vmatprep.subr.mxu0 0.0
  %210 = vmatpush1.xpose.msra.mxu0 0.0
  %211 = vmatprep.subr.mxu0 0.0
  %212 = vmatpush1.xpose.msra.mxu0 0.0
  %213 = vmatprep.subr.mxu0 0.0
  %214 = vmatpush1.xpose.msra.mxu0 0.0
  %215 = vmatprep.subr.mxu0 0.0
  %216 = vmatpush1.xpose.msra.mxu0 0.0
  %217 = vmatprep.subr.mxu0 0.0
  %218 = vmatpush1.xpose.msra.mxu0 0.0
  %219 = vmatprep.mubr.f32.mxu0 0.0
  %220 = vmatmul.mubr.f32.gmra.mrb[0].mxu0 %v87
  %v221 = vpop.f32.mrb[0].mxu0
  %v222 = vadd.f32 %v53, %v221
  %v223 = vpop.f32.mrb[0].mxu0
  %224 = vmatprep.mubr.f32.mxu0 0.0
  %225 = vmatmul.mubr.f32.gmra.mrb[0].mxu0 %v90
  %v226 = vpop.f32.mrb[0].mxu0
  %v227 = vadd.f32 %v58, %v226
  %v228 = vpop.f32.mrb[0].mxu0
  %229 = vmatprep.mubr.f32.mxu0 0.0
  %230 = vmatmul.mubr.f32.gmra.mrb[0].mxu0 %v93
  %v231 = vpop.f32.mrb[0].mxu0
  %v232 = vadd.f32 %v63, %v231
  %v233 = vpop.f32.mrb[0].mxu0
  %234 = vmatprep.mubr.f32.mxu0 0.0
  %235 = vmatmul.mubr.f32.gmra.mrb[0].mxu0 %v96
  %v236 = vpop.f32.mrb[0].mxu0
  %v237 = vadd.f32 %v68, %v236
  %v238 = vpop.f32.mrb[0].mxu0
  %239 = vmatprep.mubr.f32.mxu0 0.0
  %240 = vmatmul.mubr.f32.gmra.mrb[0].mxu0 %v99
  %v241 = vpop.f32.mrb[0].mxu0
  %v242 = vadd.f32 %v73, %v241
  %v243 = vpop.f32.mrb[0].mxu0
  %244 = vmatprep.mubr.f32.mxu0 0.0
  %245 = vmatmul.mubr.f32.gmra.mrb[0].mxu0 %v102
  %v246 = vpop.f32.mrb[0].mxu0
  %v247 = vadd.f32 %v78, %v246
  %v248 = vpop.f32.mrb[0].mxu0
  %249 = vmatprep.mubr.f32.mxu0 0.0
  %250 = vmatmul.mubr.f32.gmra.mrb[0].mxu0 %v105
  %v251 = vpop.f32.mrb[0].mxu0
  %v252 = vadd.f32 %v83, %v251
  %v253 = vpop.f32.mrb[0].mxu0
  %254 = vdwg.mxu0
  %v255 = vmax.f32 %v222, 0.0
  %v256 = vmax.f32 %v227, 0.0
  %v257 = vmax.f32 %v232, 0.0
  %v258 = vmax.f32 %v237, 0.0
  %v259 = vmax.f32 %v242, 0.0
  %v260 = vmax.f32 %v247, 0.0
  %v261 = vmax.f32 %v252, 0.0
  %v262 = vld [vmem:[%s3] sm:$0xf]
  %v263 = vld [vmem:[%s4] sm:$0xf]
  %265 = vset.pattern.permute.xlu0 0
  %266 = vperm.xlu0 %265, %v263
  %v267 = vpop.permute.xlu0 %266
  %vm269 = vcmask 408576
  %v271 = vsel %vm269, %v262, 0
  %vm273 = vcmask 1041408
  %v275 = vsel %vm273, %v261, 0
  %277 = vmatprep.subr.mxu0 0.0
  %278 = vmatpush1.msra.mxu0 %v255
  %279 = vmatprep.subr.mxu0 0.0
  %280 = vmatpush1.msra.mxu0 %v256
  %281 = vmatprep.subr.mxu0 0.0
  %282 = vmatpush1.msra.mxu0 %v257
  %283 = vmatprep.subr.mxu0 0.0
  %284 = vmatpush1.msra.mxu0 %v258
  %285 = vmatprep.subr.mxu0 0.0
  %286 = vmatpush1.msra.mxu0 %v259
  %287 = vmatprep.subr.mxu0 0.0
  %288 = vmatpush1.msra.mxu0 %v260
  %289 = vmatprep.subr.mxu0 0.0
  %290 = vmatpush1.msra.mxu0 %v275
  %291 = vmatprep.subr.mxu0 0.0
  %292 = vmatpush1.msra.mxu0 0.0
  %293 = vmatprep.subr.mxu0 0.0
  %294 = vmatpush1.msra.mxu0 0.0
  %295 = vmatprep.subr.mxu0 0.0
  %296 = vmatpush1.msra.mxu0 0.0
  %297 = vmatprep.subr.mxu0 0.0
  %298 = vmatpush1.msra.mxu0 0.0
  %299 = vmatprep.subr.mxu0 0.0
  %300 = vmatpush1.msra.mxu0 0.0
  %301 = vmatprep.subr.mxu0 0.0
  %302 = vmatpush1.msra.mxu0 0.0
  %303 = vmatprep.subr.mxu0 0.0
  %304 = vmatpush1.msra.mxu0 0.0
  %305 = vmatprep.subr.mxu0 0.0
  %306 = vmatpush1.msra.mxu0 0.0
  %307 = vmatprep.subr.mxu0 0.0
  %308 = vmatpush1.msra.mxu0 0.0
  %309 = vmatprep.subr.mxu0 0.0
  %310 = vmatpush1.msra.mxu0 0.0
  %311 = vmatprep.subr.mxu0 0.0
  %312 = vmatpush1.msra.mxu0 0.0
  %313 = vmatprep.subr.mxu0 0.0
  %314 = vmatpush1.msra.mxu0 0.0
  %315 = vmatprep.subr.mxu0 0.0
  %316 = vmatpush1.msra.mxu0 0.0
  %317 = vmatprep.subr.mxu0 0.0
  %318 = vmatpush1.msra.mxu0 0.0
  %319 = vmatprep.subr.mxu0 0.0
  %320 = vmatpush1.msra.mxu0 0.0
  %321 = vmatprep.subr.mxu0 0.0
  %322 = vmatpush1.msra.mxu0 0.0
  %323 = vmatprep.subr.mxu0 0.0
  %324 = vmatpush1.msra.mxu0 0.0
  %325 = vmatprep.subr.mxu0 0.0
  %326 = vmatpush1.msra.mxu0 0.0
  %327 = vmatprep.subr.mxu0 0.0
  %328 = vmatpush1.msra.mxu0 0.0
  %329 = vmatprep.subr.mxu0 0.0
  %330 = vmatpush1.msra.mxu0 0.0
  %331 = vmatprep.subr.mxu0 0.0
  %332 = vmatpush1.msra.mxu0 0.0
  %333 = vmatprep.subr.mxu0 0.0
  %334 = vmatpush1.msra.mxu0 0.0
  %335 = vmatprep.subr.mxu0 0.0
  %336 = vmatpush1.msra.mxu0 0.0
  %337 = vmatprep.subr.mxu0 0.0
  %338 = vmatpush1.msra.mxu0 0.0
  %339 = vmatprep.subr.mxu0 0.0
  %340 = vmatpush1.msra.mxu0 0.0
  %341 = vmatprep.mubr.f32.mxu0 0.0
  %342 = vmatmul.mubr.f32.gmra.mrb[0].mxu0 %v271
  %v343 = vpop.f32.mrb[0].mxu0
  %v344 = vadd.f32 %v267, %v343
  %v345 = vpop.f32.mrb[0].mxu0
  %346 = vdwg.mxu0
  %347 = vst [vmem:[%s5] sm:$0xf] %v344
  // Predicated region
  $region22: #{tpu_custom_call.1} parent=0 // pred_check
    _
  $region23: #{tpu_custom_call.1} parent=0 // pred_check_branch
    %349 = sbr.rel (0) target = $region25
  $region24: #{tpu_custom_call.1} parent=0 // pred_region
    _
  $region25: #{tpu_custom_call.1} parent=0 // pred_fallthru
    _
  // Predicated region
  $region26: #{tpu_custom_call.1} parent=0 // pred_check
    _
  $region27: #{tpu_custom_call.1} parent=0 // pred_check_branch
    %351 = sbr.rel (0) target = $region29
  $region28: #{tpu_custom_call.1} parent=0 // pred_region
    _
  $region29: #{tpu_custom_call.1} parent=0 // pred_fallthru
    _

</llo_original>
